<compile_context>
chip_gen: v7x
topology: tpu7x:2x2x1
jax: 0.10.0
libtpu: 0.0.40
codegen_flags: <defaults>
</compile_context>

<pallas_src>
import functools

import jax
import jax.numpy as jnp
from jax.experimental import pallas as pl
from jax.experimental.pallas import tpu as pltpu


def _feature_attention_kernel(x_ref, w1_ref, b1_ref, w2_ref, b2_ref, o_ref, *,
                              compute_dtype):
    x = x_ref[...]                                              # [TB, F] f32
    xm = x.astype(compute_dtype)
    # hidden = ReLU(x @ W1 + b1)   (f32 accumulation on the MXU)
    h = jnp.dot(xm, w1_ref[...].astype(compute_dtype),
                preferred_element_type=jnp.float32)
    h = jnp.maximum(h + b1_ref[...], 0.0)                       # [TB, H]
    # attn weights = sigmoid(h @ W2 + b2)
    logits = jnp.dot(h.astype(compute_dtype), w2_ref[...].astype(compute_dtype),
                     preferred_element_type=jnp.float32)
    weights = jax.nn.sigmoid(logits + b2_ref[...])              # [TB, F]
    # gated output
    o_ref[...] = (x * weights).astype(o_ref.dtype)


def _round_up(v, m):
    return ((v + m - 1) // m) * m


def _cdiv(a, b):
    return -(-a // b)


def feature_attention(x, w1, b1, w2, b2, *, tile_b=None,
                      vmem_budget_bytes=40 * 1024 * 1024,
                      use_bf16_matmul=False):
    """x: [B, F] f32.  w1: [F, H], b1: [H], w2: [H, F], b2: [F]  (H = F // 2).

    Weights are stored pre-transposed relative to nn.Linear's [out, in] layout
    so the kernel does plain row-major x @ W1 and h @ W2 on the MXU.
    """
    B, F = x.shape
    H = w1.shape[1]
    dtype = x.dtype
    itemsize = 4  # f32 activations; budget with 4B

    # ---- tile_b selection under a v7x-safe VMEM budget ----
    resident = itemsize * (2 * F * H + H + F)        # W1 + W2 + b1 + b2
    per_row = itemsize * (2 * F * 2 + H)             # x/out double-buffered + h
    rows_fit = max(8, ((vmem_budget_bytes - resident) // per_row) // 8 * 8)
    max_tile = max(8, min(rows_fit, 8192))
    B8 = _round_up(B, 8)

    if tile_b is None:
        if B <= min(512, max_tile):
            # Single grid step; block == full batch dim (always legal).
            tile_b = B
        else:
            # Even number of grid steps >= 4: pipeline overlap on each of
            # v7x's 2 TensorCores and no odd-tail imbalance.
            n_steps = max(4, _round_up(_cdiv(B8, max_tile), 2))
            tile_b = min(max_tile, max(8, _round_up(_cdiv(B8, n_steps), 8)))
    else:
        tile_b = int(tile_b)
        if tile_b >= B:
            tile_b = B
        else:
            tile_b = max(8, (tile_b // 8) * 8)

    grid_b = _cdiv(B, tile_b)

    # ---- operand dtypes (no padding of x / out / H anywhere) ----
    compute_dtype = jnp.bfloat16 if use_bf16_matmul else jnp.float32
    w_store_dtype = jnp.bfloat16 if use_bf16_matmul else w1.dtype
    w1_c = w1.astype(w_store_dtype)
    w2_c = w2.astype(w_store_dtype)
    b1_2d = b1.reshape(1, H)
    b2_2d = b2.reshape(1, F)

    # ---- explicit VMEM limit (v7x-safe) + scheduler cost hint ----
    vmem_needed = resident + per_row * tile_b + (1 << 20)
    vmem_limit = int(min(max(2 * vmem_needed, 16 * 1024 * 1024),
                         48 * 1024 * 1024))
    cost = pl.CostEstimate(
        flops=4 * B * F * H + 5 * B * F,
        transcendentals=B * F,
        bytes_accessed=itemsize * (2 * B * F + 2 * F * H + H + F),
    )

    kernel = functools.partial(_feature_attention_kernel,
                               compute_dtype=compute_dtype)

    out = pl.pallas_call(
        kernel,
        out_shape=jax.ShapeDtypeStruct((B, F), dtype),
        grid_spec=pltpu.PrefetchScalarGridSpec(
            num_scalar_prefetch=0,
            grid=(grid_b,),
            in_specs=[
                pl.BlockSpec((tile_b, F), lambda i: (i, 0)),    # x tile
                pl.BlockSpec((F, H), lambda i: (0, 0)),         # W1 (resident)
                pl.BlockSpec((1, H), lambda i: (0, 0)),         # b1
                pl.BlockSpec((H, F), lambda i: (0, 0)),         # W2 (resident)
                pl.BlockSpec((1, F), lambda i: (0, 0)),         # b2
            ],
            out_specs=pl.BlockSpec((tile_b, F), lambda i: (i, 0)),
        ),
        compiler_params=pltpu.CompilerParams(
            dimension_semantics=("parallel",),
            vmem_limit_bytes=vmem_limit,
        ),
        cost_estimate=cost,
    )(x, w1_c, b1_2d, w2_c, b2_2d)

    return out


def feature_attention_ref(x, w1, b1, w2, b2):
    h = jnp.maximum(x @ w1 + b1, 0.0)
    w = jax.nn.sigmoid(h @ w2 + b2)
    return x * w


if __name__ == "__main__":
    key = jax.random.PRNGKey(0)
    B, F = 8, 32          # batch=8, feature_dim=32 -> hidden = 16
    H = F // 2

    k_x, k_w1, k_b1, k_w2, k_b2, k_x2, k_x3 = jax.random.split(key, 7)
    x = jax.random.normal(k_x, (B, F), dtype=jnp.float32)

    # Deterministic synthetic parameters (nn.Linear-style, pre-transposed).
    w1 = jax.random.normal(k_w1, (F, H), dtype=jnp.float32) * (1.0 / jnp.sqrt(F))
    b1 = jax.random.normal(k_b1, (H,), dtype=jnp.float32) * 0.1
    w2 = jax.random.normal(k_w2, (H, F), dtype=jnp.float32) * (1.0 / jnp.sqrt(H))
    b2 = jax.random.normal(k_b2, (F,), dtype=jnp.float32) * 0.1

    # Small demo shape (single grid step, block == full array).
    out = jax.block_until_ready(feature_attention(x, w1, b1, w2, b2))
    ref = feature_attention_ref(x, w1, b1, w2, b2)
    assert out.shape == (B, F)
    assert jnp.allclose(out, ref, atol=1e-5, rtol=1e-5), "mismatch vs reference"

    # Larger batch: multi-step pipelined grid with a masked partial last block.
    B2 = 1000
    x2 = jax.random.normal(k_x2, (B2, F), dtype=jnp.float32)
    out2 = jax.block_until_ready(feature_attention(x2, w1, b1, w2, b2))
    ref2 = feature_attention_ref(x2, w1, b1, w2, b2)
    assert out2.shape == (B2, F)
    assert jnp.allclose(out2, ref2, atol=1e-5, rtol=1e-5), "mismatch (large batch)"

    # Batch that is not a multiple of 8: single full-dim block, no padding.
    B3 = 37
    x3 = jax.random.normal(k_x3, (B3, F), dtype=jnp.float32)
    out3 = jax.block_until_ready(feature_attention(x3, w1, b1, w2, b2))
    ref3 = feature_attention_ref(x3, w1, b1, w2, b2)
    assert out3.shape == (B3, F)
    assert jnp.allclose(out3, ref3, atol=1e-5, rtol=1e-5), "mismatch (odd batch)"

    print("KERNEL_OK")
</pallas_src>

<mosaic_0001>
module attributes {stable_mosaic.version = 11 : i64} {
  func.func @_feature_attention_kernel(%arg0: i32, %arg1: memref<8x32xf32, #tpu.memory_space<vmem>>, %arg2: memref<32x16xf32, #tpu.memory_space<vmem>>, %arg3: memref<1x16xf32, #tpu.memory_space<vmem>>, %arg4: memref<16x32xf32, #tpu.memory_space<vmem>>, %arg5: memref<1x32xf32, #tpu.memory_space<vmem>>, %arg6: memref<8x32xf32, #tpu.memory_space<vmem>>) attributes {dimension_semantics = [#tpu.dimension_semantics<parallel>], iteration_bounds = array<i64: 1>, scalar_prefetch = 0 : i64, scratch_operands = 0 : i64, tpu.core_type = #tpu.core_type<tc>, window_params = [{transform_indices = @transform_0, window_bounds = array<i64: 8, 32>}, {pipeline_mode = #tpu.pipeline_mode<synchronous>, transform_indices = @transform_1, window_bounds = array<i64: 32, 16>}, {pipeline_mode = #tpu.pipeline_mode<synchronous>, transform_indices = @transform_2, window_bounds = array<i64: 1, 16>}, {pipeline_mode = #tpu.pipeline_mode<synchronous>, transform_indices = @transform_3, window_bounds = array<i64: 16, 32>}, {pipeline_mode = #tpu.pipeline_mode<synchronous>, transform_indices = @transform_4, window_bounds = array<i64: 1, 32>}, {transform_indices = @transform_5, window_bounds = array<i64: 8, 32>}]} {
    %c0 = arith.constant 0 : index
    %c0_0 = arith.constant 0 : index
    %0 = vector.load %arg1[%c0, %c0_0] : memref<8x32xf32, #tpu.memory_space<vmem>>, vector<8x32xf32>
    %c0_1 = arith.constant 0 : index
    %c0_2 = arith.constant 0 : index
    %1 = vector.load %arg2[%c0_1, %c0_2] : memref<32x16xf32, #tpu.memory_space<vmem>>, vector<32x16xf32>
    %cst = arith.constant dense<0.000000e+00> : vector<8x16xf32>
    %2 = tpu.matmul %0, %1, %cst {dimension_numbers = #tpu.dot_dimension_numbers<[1], [0], [0], [1], [0, 0, 1, 1], [], []>} : vector<8x32xf32>, vector<32x16xf32>, vector<8x16xf32> -> vector<8x16xf32>
    %c0_3 = arith.constant 0 : index
    %c0_4 = arith.constant 0 : index
    %3 = vector.load %arg3[%c0_3, %c0_4] : memref<1x16xf32, #tpu.memory_space<vmem>>, vector<1x16xf32>
    %4 = vector.broadcast %3 : vector<1x16xf32> to vector<8x16xf32>
    %5 = arith.addf %2, %4 : vector<8x16xf32>
    %cst_5 = arith.constant 0.000000e+00 : f32
    %6 = vector.broadcast %cst_5 : f32 to vector<8x16xf32>
    %7 = arith.maximumf %5, %6 : vector<8x16xf32>
    %c0_6 = arith.constant 0 : index
    %c0_7 = arith.constant 0 : index
    %8 = vector.load %arg4[%c0_6, %c0_7] : memref<16x32xf32, #tpu.memory_space<vmem>>, vector<16x32xf32>
    %cst_8 = arith.constant dense<0.000000e+00> : vector<8x32xf32>
    %9 = tpu.matmul %7, %8, %cst_8 {dimension_numbers = #tpu.dot_dimension_numbers<[1], [0], [0], [1], [0, 0, 1, 1], [], []>} : vector<8x16xf32>, vector<16x32xf32>, vector<8x32xf32> -> vector<8x32xf32>
    %c0_9 = arith.constant 0 : index
    %c0_10 = arith.constant 0 : index
    %10 = vector.load %arg5[%c0_9, %c0_10] : memref<1x32xf32, #tpu.memory_space<vmem>>, vector<1x32xf32>
    %11 = vector.broadcast %10 : vector<1x32xf32> to vector<8x32xf32>
    %12 = arith.addf %9, %11 : vector<8x32xf32>
    %13 = arith.negf %12 : vector<8x32xf32>
    %14 = math.exp %13 : vector<8x32xf32>
    %cst_11 = arith.constant 1.000000e+00 : f32
    %15 = vector.broadcast %cst_11 : f32 to vector<8x32xf32>
    %16 = arith.addf %15, %14 : vector<8x32xf32>
    %17 = arith.divf %15, %16 : vector<8x32xf32>
    %18 = arith.mulf %0, %17 : vector<8x32xf32>
    %c0_12 = arith.constant 0 : index
    %c0_13 = arith.constant 0 : index
    %19 = vector.load %arg6[%c0_12, %c0_13] : memref<8x32xf32, #tpu.memory_space<vmem>>, vector<8x32xf32>
    tpu.vector_store %arg6[%c0_12, %c0_13], %18 {strides = array<i32>} : memref<8x32xf32, #tpu.memory_space<vmem>>, vector<8x32xf32>,
    return
  }
  func.func @transform_0(%arg0: i32) -> (i32, i32) {
    %c0_i32 = arith.constant 0 : i32
    %c0_i32_0 = arith.constant 0 : i32
    return %arg0, %c0_i32 : i32, i32
  }
  func.func @transform_1(%arg0: i32) -> (i32, i32) {
    %c0_i32 = arith.constant 0 : i32
    %c0_i32_0 = arith.constant 0 : i32
    %c0_i32_1 = arith.constant 0 : i32
    return %c0_i32, %c0_i32_0 : i32, i32
  }
  func.func @transform_2(%arg0: i32) -> (i32, i32) {
    %c0_i32 = arith.constant 0 : i32
    %c0_i32_0 = arith.constant 0 : i32
    %c0_i32_1 = arith.constant 0 : i32
    return %c0_i32, %c0_i32_0 : i32, i32
  }
  func.func @transform_3(%arg0: i32) -> (i32, i32) {
    %c0_i32 = arith.constant 0 : i32
    %c0_i32_0 = arith.constant 0 : i32
    %c0_i32_1 = arith.constant 0 : i32
    return %c0_i32, %c0_i32_0 : i32, i32
  }
  func.func @transform_4(%arg0: i32) -> (i32, i32) {
    %c0_i32 = arith.constant 0 : i32
    %c0_i32_0 = arith.constant 0 : i32
    %c0_i32_1 = arith.constant 0 : i32
    return %c0_i32, %c0_i32_0 : i32, i32
  }
  func.func @transform_5(%arg0: i32) -> (i32, i32) {
    %c0_i32 = arith.constant 0 : i32
    %c0_i32_0 = arith.constant 0 : i32
    return %arg0, %c0_i32 : i32, i32
  }
}

</mosaic_0001>

<llo_original>
// kernel: tpu_custom_call.1
$region0: #{tpu_custom_call.1}
  #allocation0 [shape = 'u32[]', space=smem, size = 0x4, offset = 0x4, fixed_abs, tag = 'smem constant byte address 0x4 - core index']
  #allocation1 [shape = 'u32[144,128]{1,0:T(1,128)}', space=vmem, size = 0x12000, scoped, tag = 'internal scratch']
  %s0 = inlined_call_operand.vmem [shape: f32[8,32], index: 0, kind: input, shape index: {}]
  %s1 = inlined_call_operand.vmem [shape: f32[32,16], index: 1, kind: input, shape index: {}]
  %s2 = inlined_call_operand.vmem [shape: f32[1,16], index: 2, kind: input, shape index: {}]
  %s3 = inlined_call_operand.vmem [shape: f32[16,32], index: 3, kind: input, shape index: {}]
  %s4 = inlined_call_operand.vmem [shape: f32[1,32], index: 4, kind: input, shape index: {}]
  %s5 = inlined_call_operand.hbm [shape: f32[8,32], index: 5, kind: output, shape index: {}]
  %s6 = sld [smem:[#allocation0]]
  $region30: #{tpu_custom_call.1} parent=0
    _
  %s8 = ssub.s32 1, %s6
  %s9 = scalar_select 0, %s8, %s6
  $region1: #{tpu_custom_call.1} parent=0
    #allocation2 [shape = 'u8[4096]{0}', space=vmem, size = 0x1000, scoped, tag = 'output window, operand 0, single buffered']
    #allocation3 [shape = 's32[1]{0}', space=sflag, size = 0x4, scoped, tag = 'scoped memory for tpu_custom_call.1']
    %10 = vsyncpa [#allocation3], 0
    // Predicated region
    $region2: #{tpu_custom_call.1} parent=1 // pred_check
      _
    $region3: #{tpu_custom_call.1} parent=1 // pred_check_branch
      %12 = sbr.rel (0) target = $region5
    $region4: #{tpu_custom_call.1} parent=1 // pred_region
      _
    $region5: #{tpu_custom_call.1} parent=1 // pred_fallthru
      _
    // Predicated region
    $region6: #{tpu_custom_call.1} parent=1 // pred_check
      _
    $region7: #{tpu_custom_call.1} parent=1 // pred_check_branch
      %14 = sbr.rel (0) target = $region9
    $region8: #{tpu_custom_call.1} parent=1 // pred_region
      _
    $region9: #{tpu_custom_call.1} parent=1 // pred_fallthru
      _
    // Predicated region
    $region10: #{tpu_custom_call.1} parent=1 // pred_check
      _
    $region11: #{tpu_custom_call.1} parent=1 // pred_check_branch
      %16 = sbr.rel (0) target = $region13
    $region12: #{tpu_custom_call.1} parent=1 // pred_region
      _
    $region13: #{tpu_custom_call.1} parent=1 // pred_fallthru
      _
    // Predicated region
    $region14: #{tpu_custom_call.1} parent=1 // pred_check
      _
    $region15: #{tpu_custom_call.1} parent=1 // pred_check_branch
      %18 = sbr.rel (0) target = $region17
    $region16: #{tpu_custom_call.1} parent=1 // pred_region
      _
    $region17: #{tpu_custom_call.1} parent=1 // pred_fallthru
      _
    // Predicated region
    $region18: #{tpu_custom_call.1} parent=1 // pred_check
      _
    $region19: #{tpu_custom_call.1} parent=1 // pred_check_branch
      %20 = sbr.rel (0) target = $region21
    $region20: #{tpu_custom_call.1} parent=1 // pred_region
      _
    $region21: #{tpu_custom_call.1} parent=1 // pred_fallthru
      _
    %v21 = vld [vmem:[%s0] sm:$0xff]
    %v22 = vld [vmem:[%s1] sm:$0xff]
    %v23 = vld [vmem:[%s1 + $0x8] sm:$0xff]
    %v24 = vld [vmem:[%s1 + $0x10] sm:$0xff]
    %v25 = vld [vmem:[%s1 + $0x18] sm:$0xff]
    %v26 = vld [vmem:[%s2] sm:$0x1]
    %v28 = vlaneseq
    %v29 = vshrl.u32 %v28, 7
    %v30 = vsub.s32 0, %v29
    %v31 = vrot.slane %v26, %v30
    %vm33 = vcmask 261120
    %v35 = vsel %vm33, %v21, 0
    %37 = vmatprep.subr.mxu0 0.0
    %38 = vmatpush1.msra.mxu0 %v22
    %39 = vmatprep.subr.mxu0 0.0
    %40 = vmatpush1.msra.mxu0 %v23
    %41 = vmatprep.subr.mxu0 0.0
    %42 = vmatpush1.msra.mxu0 %v24
    %43 = vmatprep.subr.mxu0 0.0
    %44 = vmatpush1.msra.mxu0 %v25
    %45 = vmatprep.subr.mxu0 0.0
    %46 = vmatpush1.msra.mxu0 0.0
    %47 = vmatprep.subr.mxu0 0.0
    %48 = vmatpush1.msra.mxu0 0.0
    %49 = vmatprep.subr.mxu0 0.0
    %50 = vmatpush1.msra.mxu0 0.0
    %51 = vmatprep.subr.mxu0 0.0
    %52 = vmatpush1.msra.mxu0 0.0
    %53 = vmatprep.subr.mxu0 0.0
    %54 = vmatpush1.msra.mxu0 0.0
    %55 = vmatprep.subr.mxu0 0.0
    %56 = vmatpush1.msra.mxu0 0.0
    %57 = vmatprep.subr.mxu0 0.0
    %58 = vmatpush1.msra.mxu0 0.0
    %59 = vmatprep.subr.mxu0 0.0
    %60 = vmatpush1.msra.mxu0 0.0
    %61 = vmatprep.subr.mxu0 0.0
    %62 = vmatpush1.msra.mxu0 0.0
    %63 = vmatprep.subr.mxu0 0.0
    %64 = vmatpush1.msra.mxu0 0.0
    %65 = vmatprep.subr.mxu0 0.0
    %66 = vmatpush1.msra.mxu0 0.0
    %67 = vmatprep.subr.mxu0 0.0
    %68 = vmatpush1.msra.mxu0 0.0
    %69 = vmatprep.subr.mxu0 0.0
    %70 = vmatpush1.msra.mxu0 0.0
    %71 = vmatprep.subr.mxu0 0.0
    %72 = vmatpush1.msra.mxu0 0.0
    %73 = vmatprep.subr.mxu0 0.0
    %74 = vmatpush1.msra.mxu0 0.0
    %75 = vmatprep.subr.mxu0 0.0
    %76 = vmatpush1.msra.mxu0 0.0
    %77 = vmatprep.subr.mxu0 0.0
    %78 = vmatpush1.msra.mxu0 0.0
    %79 = vmatprep.subr.mxu0 0.0
    %80 = vmatpush1.msra.mxu0 0.0
    %81 = vmatprep.subr.mxu0 0.0
    %82 = vmatpush1.msra.mxu0 0.0
    %83 = vmatprep.subr.mxu0 0.0
    %84 = vmatpush1.msra.mxu0 0.0
    %85 = vmatprep.subr.mxu0 0.0
    %86 = vmatpush1.msra.mxu0 0.0
    %87 = vmatprep.subr.mxu0 0.0
    %88 = vmatpush1.msra.mxu0 0.0
    %89 = vmatprep.subr.mxu0 0.0
    %90 = vmatpush1.msra.mxu0 0.0
    %91 = vmatprep.subr.mxu0 0.0
    %92 = vmatpush1.msra.mxu0 0.0
    %93 = vmatprep.subr.mxu0 0.0
    %94 = vmatpush1.msra.mxu0 0.0
    %95 = vmatprep.subr.mxu0 0.0
    %96 = vmatpush1.msra.mxu0 0.0
    %97 = vmatprep.subr.mxu0 0.0
    %98 = vmatpush1.msra.mxu0 0.0
    %99 = vmatprep.subr.mxu0 0.0
    %100 = vmatpush1.msra.mxu0 0.0
    %101 = vmatprep.mubr.f32.mxu0 0.0
    %102 = vmatmul.mubr.f32.gmra.mrb[0].mxu0 %v35
    %v103 = vpop.f32.mrb[0].mxu0
    %v104 = vadd.f32 %v31, %v103
    %v105 = vpop.f32.mrb[0].mxu0
    %106 = vdwg.mxu0
    %v107 = vmax.f32 %v104, 0.0
    %v108 = vld [vmem:[%s3] sm:$0xff]
    %v109 = vld [vmem:[%s3 + $0x8] sm:$0xff]
    %v110 = vld [vmem:[%s4] sm:$0x1]
    %v112 = vlaneseq
    %v113 = vshrl.u32 %v112, 7
    %v114 = vsub.s32 0, %v113
    %v115 = vrot.slane %v110, %v114
    %vm117 = vcmask 130048
    %v119 = vsel %vm117, %v107, 0
    %121 = vmatprep.subr.mxu0 0.0
    %122 = vmatpush1.msra.mxu0 %v108
    %123 = vmatprep.subr.mxu0 0.0
    %124 = vmatpush1.msra.mxu0 %v109
    %125 = vmatprep.subr.mxu0 0.0
    %126 = vmatpush1.msra.mxu0 0.0
    %127 = vmatprep.subr.mxu0 0.0
    %128 = vmatpush1.msra.mxu0 0.0
    %129 = vmatprep.subr.mxu0 0.0
    %130 = vmatpush1.msra.mxu0 0.0
    %131 = vmatprep.subr.mxu0 0.0
    %132 = vmatpush1.msra.mxu0 0.0
    %133 = vmatprep.subr.mxu0 0.0
    %134 = vmatpush1.msra.mxu0 0.0
    %135 = vmatprep.subr.mxu0 0.0
    %136 = vmatpush1.msra.mxu0 0.0
    %137 = vmatprep.subr.mxu0 0.0
    %138 = vmatpush1.msra.mxu0 0.0
    %139 = vmatprep.subr.mxu0 0.0
    %140 = vmatpush1.msra.mxu0 0.0
    %141 = vmatprep.subr.mxu0 0.0
    %142 = vmatpush1.msra.mxu0 0.0
    %143 = vmatprep.subr.mxu0 0.0
    %144 = vmatpush1.msra.mxu0 0.0
    %145 = vmatprep.subr.mxu0 0.0
    %146 = vmatpush1.msra.mxu0 0.0
    %147 = vmatprep.subr.mxu0 0.0
    %148 = vmatpush1.msra.mxu0 0.0
    %149 = vmatprep.subr.mxu0 0.0
    %150 = vmatpush1.msra.mxu0 0.0
    %151 = vmatprep.subr.mxu0 0.0
    %152 = vmatpush1.msra.mxu0 0.0
    %153 = vmatprep.subr.mxu0 0.0
    %154 = vmatpush1.msra.mxu0 0.0
    %155 = vmatprep.subr.mxu0 0.0
    %156 = vmatpush1.msra.mxu0 0.0
    %157 = vmatprep.subr.mxu0 0.0
    %158 = vmatpush1.msra.mxu0 0.0
    %159 = vmatprep.subr.mxu0 0.0
    %160 = vmatpush1.msra.mxu0 0.0
    %161 = vmatprep.subr.mxu0 0.0
    %162 = vmatpush1.msra.mxu0 0.0
    %163 = vmatprep.subr.mxu0 0.0
    %164 = vmatpush1.msra.mxu0 0.0
    %165 = vmatprep.subr.mxu0 0.0
    %166 = vmatpush1.msra.mxu0 0.0
    %167 = vmatprep.subr.mxu0 0.0
    %168 = vmatpush1.msra.mxu0 0.0
    %169 = vmatprep.subr.mxu0 0.0
    %170 = vmatpush1.msra.mxu0 0.0
    %171 = vmatprep.subr.mxu0 0.0
    %172 = vmatpush1.msra.mxu0 0.0
    %173 = vmatprep.subr.mxu0 0.0
    %174 = vmatpush1.msra.mxu0 0.0
    %175 = vmatprep.subr.mxu0 0.0
    %176 = vmatpush1.msra.mxu0 0.0
    %177 = vmatprep.subr.mxu0 0.0
    %178 = vmatpush1.msra.mxu0 0.0
    %179 = vmatprep.subr.mxu0 0.0
    %180 = vmatpush1.msra.mxu0 0.0
    %181 = vmatprep.subr.mxu0 0.0
    %182 = vmatpush1.msra.mxu0 0.0
    %183 = vmatprep.subr.mxu0 0.0
    %184 = vmatpush1.msra.mxu0 0.0
    %185 = vmatprep.mubr.f32.mxu0 0.0
    %186 = vmatmul.mubr.f32.gmra.mrb[0].mxu0 %v119
    %v187 = vpop.f32.mrb[0].mxu0
    %v188 = vadd.f32 %v115, %v187
    %v189 = vpop.f32.mrb[0].mxu0
    %190 = vdwg.mxu0
    %v191 = vxor.u32 %v188, 2147483648
    %v192 = vmul.f32 %v191, 1.442695
    %v193 = vpow.pop %v192
    %v194 = vadd.f32 %v193, 1.0
    %v195 = vrcp.pop %v194
    %v196 = vmul.f32 1.0, %v195
    %v197 = vmul.f32 %v21, %v196
    %198 = vst.msk [vmem:[#allocation2] sm:$0xff] %vm33, %v197
    // Predicated region
    $region22: #{tpu_custom_call.1} parent=1 // pred_check
      _
    $region23: #{tpu_custom_call.1} parent=1 // pred_check_branch
      %200 = sbr.rel (0) target = $region25
    $region24: #{tpu_custom_call.1} parent=1 // pred_region
      %s202 = ssub.s32 128, 128
      %203 = vsyncadd [#allocation3], %s202
      %s205 = sshll.u32 [#allocation2], 4
      %s206 = int_to_ptr.vmem [resolvable:$true] %s205
      %208 = dma.vmem_to_hbm [thread:$0]  %s206, 128, %s5, [#allocation3]
    $region25: #{tpu_custom_call.1} parent=1 // pred_fallthru
      _
    // Predicated region
    $region26: #{tpu_custom_call.1} parent=1 // pred_check
      _
    $region27: #{tpu_custom_call.1} parent=1 // pred_check_branch
      %210 = sbr.rel (0) target = $region29
    $region28: #{tpu_custom_call.1} parent=1 // pred_region
      %211 = dma.done [#allocation3], 128
    $region29: #{tpu_custom_call.1} parent=1 // pred_fallthru
      _
    %212 = vsyncpa [#allocation3], 1

</llo_original>
